<compile_context>
chip_gen: v7x
topology: tpu7x:2x2x1
jax: 0.10.0
libtpu: 0.0.40
codegen_flags: <defaults>
</compile_context>

<pallas_src>
import functools

import jax
import jax.numpy as jnp
from jax.experimental import pallas as pl
from jax.experimental.pallas import tpu as pltpu

LANES = 128  # one lane-dense output tile holds both hidden and log-probs


def _round_up(a: int, b: int) -> int:
    return ((a + b - 1) // b) * b


def _make_kernel(input_dim: int, hidden_dim: int, output_dim: int):
    """Kernel closed over the static (unpadded) feature sizes."""

    def kernel(x_ref, w1_ref, b1_ref, w2_ref, b2_ref, out_ref):
        # ---- layer 1: hidden = relu(x @ W1 + b1), K = input_dim is tiny ----
        # Unrolled broadcast FMA on the VPU; the MXU would waste >99% of the
        # systolic array for K=2.
        x = x_ref[...].astype(jnp.float32)                    # (TILE_B, input_dim)
        w1 = w1_ref[...].astype(jnp.float32)                  # (input_dim, 128)
        h = b1_ref[...].astype(jnp.float32)                   # (1, 128) -> broadcasts
        for k in range(input_dim):                            # static unroll
            h = h + x[:, k:k + 1] * w1[k:k + 1, :]
        h = jnp.maximum(h, 0.0)                               # (TILE_B, 128)
        # Lanes >= hidden_dim of h are exactly 0 (zero-padded W1/b1).

        # ---- layer 2: logits = h @ W2_packed + b2_packed -> MXU ----
        # W2/b2 were packed so valid logits land at lanes
        # [hidden_dim, hidden_dim + output_dim); everything else is 0.
        logits = jnp.dot(h, w2_ref[...].astype(jnp.float32),
                         preferred_element_type=jnp.float32)
        logits = logits + b2_ref[...].astype(jnp.float32)     # (TILE_B, 128)

        # ---- log_softmax over the valid logit lanes only ----
        lane = jax.lax.broadcasted_iota(jnp.int32, logits.shape, 1)
        logit_lane = (lane >= hidden_dim) & (lane < hidden_dim + output_dim)
        masked = jnp.where(logit_lane, logits, -jnp.inf)
        m = jnp.max(masked, axis=-1, keepdims=True)
        lse = jnp.log(jnp.sum(jnp.exp(masked - m), axis=-1, keepdims=True)) + m
        log_probs = logits - lse

        # ---- pack: lanes [0, hd) = hidden, [hd, hd+od) = log-probs, rest 0 ----
        packed = jnp.where(logit_lane, log_probs, h)
        out_ref[...] = packed.astype(out_ref.dtype)

    return kernel


@functools.partial(jax.jit, static_argnames=("tile_b",))
def my_model_forward(x, w1, b1, w2, b2, *, tile_b: int = 4096):
    """x: [B, input_dim] -> (hidden [B, hidden_dim], log_probs [B, output_dim]).

    Weights are stored transposed vs torch (W1: [in, hidden], W2: [hidden, out])
    so the kernel computes y = x @ W + b directly.
    """
    B, input_dim = x.shape
    hidden_dim = w1.shape[1]
    output_dim = w2.shape[1]
    assert hidden_dim + output_dim <= LANES, "packed-output layout needs hd+od <= 128"

    f32 = jnp.float32  # keep params / compute in f32 (matches torch defaults)

    # --- pack parameters for the single 128-lane output layout ---
    w1_p = jnp.pad(w1.astype(f32), ((0, 0), (0, LANES - hidden_dim)))          # (in, 128)
    b1_p = jnp.pad(b1.astype(f32), (0, LANES - hidden_dim)).reshape(1, LANES)  # (1, 128)
    w2_p = jnp.zeros((LANES, LANES), f32).at[
        :hidden_dim, hidden_dim:hidden_dim + output_dim].set(w2.astype(f32))   # (128, 128)
    b2_p = jnp.zeros((1, LANES), f32).at[
        0, hidden_dim:hidden_dim + output_dim].set(b2.astype(f32))             # (1, 128)

    # --- batch tiling: big tiles to amortize per-step overhead, but keep the
    #     grid >= 2 steps when the batch allows it so v7x's 2 TCs both work ---
    b8 = _round_up(B, 8)
    if b8 >= 16:
        tile_b = min(tile_b, _round_up((b8 + 1) // 2, 8))
    tile_b = max(8, min(tile_b, b8))
    tile_b = _round_up(tile_b, 8)
    b_pad = _round_up(B, tile_b)

    x_p = jnp.pad(x.astype(f32), ((0, b_pad - B), (0, 0)))
    grid = (b_pad // tile_b,)

    const = lambda i: (0, 0)  # weights/biases: VMEM-resident, single-buffered
    packed = pl.pallas_call(
        _make_kernel(input_dim, hidden_dim, output_dim),
        out_shape=jax.ShapeDtypeStruct((b_pad, LANES), x.dtype),
        grid=grid,
        in_specs=[
            # x: batch-tiled, double-buffered by the pipeline.
            pl.BlockSpec((tile_b, input_dim), lambda i: (i, 0)),
            # Params: constant index_map + single buffer (no re-DMA, no 2nd buf).
            pl.BlockSpec((input_dim, LANES), const, pipeline_mode=pl.Buffered(1)),
            pl.BlockSpec((1, LANES), const, pipeline_mode=pl.Buffered(1)),
            pl.BlockSpec((LANES, LANES), const, pipeline_mode=pl.Buffered(1)),
            pl.BlockSpec((1, LANES), const, pipeline_mode=pl.Buffered(1)),
        ],
        out_specs=pl.BlockSpec((tile_b, LANES), lambda i: (i, 0)),
        compiler_params=pltpu.CompilerParams(
            # Batch axis is independent -> megacore-shard on v7x (2 TCs).
            dimension_semantics=("parallel",),
            # ~8 MiB used at tile_b=4096; stay well under v7x's 64 MiB physical.
            vmem_limit_bytes=32 * 1024 * 1024,
        ),
    )(x_p, w1_p, b1_p, w2_p, b2_p)

    # Strip batch padding and unpack the single lane-dense slab outside the kernel.
    hidden = packed[:B, :hidden_dim]
    out = packed[:B, hidden_dim:hidden_dim + output_dim]
    return hidden, out


def init_params(key, input_dim, hidden_dim, output_dim, dtype=jnp.float32):
    """Deterministic init mimicking torch.nn.Linear default U[-1/sqrt(fan_in), 1/sqrt(fan_in)]."""
    k1, k2, k3, k4 = jax.random.split(key, 4)
    lim1 = 1.0 / jnp.sqrt(input_dim)
    lim2 = 1.0 / jnp.sqrt(hidden_dim)
    w1 = jax.random.uniform(k1, (input_dim, hidden_dim), dtype, -lim1, lim1)
    b1 = jax.random.uniform(k2, (hidden_dim,), dtype, -lim1, lim1)
    w2 = jax.random.uniform(k3, (hidden_dim, output_dim), dtype, -lim2, lim2)
    b2 = jax.random.uniform(k4, (output_dim,), dtype, -lim2, lim2)
    return w1, b1, w2, b2


def _reference(x, w1, b1, w2, b2):
    h = jnp.maximum(x @ w1 + b1, 0.0)
    logits = h @ w2 + b2
    lp = logits - jax.scipy.special.logsumexp(logits, axis=-1, keepdims=True)
    return h, lp


if __name__ == "__main__":
    input_dim, hidden_dim, output_dim = 2, 10, 2
    key = jax.random.PRNGKey(0)
    kx, kp, kx2 = jax.random.split(key, 3)
    w1, b1, w2, b2 = init_params(kp, input_dim, hidden_dim, output_dim)

    # Small batch (single grid step).
    batch = 8
    x = jax.random.normal(kx, (batch, input_dim), dtype=jnp.float32)
    hidden, out = my_model_forward(x, w1, b1, w2, b2)
    jax.block_until_ready((hidden, out))
    h_ref, o_ref = _reference(x, w1, b1, w2, b2)
    assert hidden.shape == (batch, hidden_dim) and out.shape == (batch, output_dim)
    assert jnp.allclose(hidden, h_ref, atol=1e-5), "hidden mismatch"
    assert jnp.allclose(out, o_ref, atol=1e-5), "log_softmax mismatch"

    # Larger batch (exercises the >=2-step parallel grid path).
    batch2 = 64
    x2 = jax.random.normal(kx2, (batch2, input_dim), dtype=jnp.float32)
    hidden2, out2 = my_model_forward(x2, w1, b1, w2, b2)
    jax.block_until_ready((hidden2, out2))
    h_ref2, o_ref2 = _reference(x2, w1, b1, w2, b2)
    assert jnp.allclose(hidden2, h_ref2, atol=1e-5), "hidden mismatch (multi-tile)"
    assert jnp.allclose(out2, o_ref2, atol=1e-5), "log_softmax mismatch (multi-tile)"

    print("KERNEL_OK")
</pallas_src>

<mosaic_0001>
module attributes {stable_mosaic.version = 11 : i64} {
  func.func @kernel(%arg0: i32, %arg1: memref<8x2xf32, #tpu.memory_space<vmem>>, %arg2: memref<2x128xf32, #tpu.memory_space<vmem>>, %arg3: memref<1x128xf32, #tpu.memory_space<vmem>>, %arg4: memref<128x128xf32, #tpu.memory_space<vmem>>, %arg5: memref<1x128xf32, #tpu.memory_space<vmem>>, %arg6: memref<8x128xf32, #tpu.memory_space<vmem>>) attributes {dimension_semantics = [#tpu.dimension_semantics<parallel>], iteration_bounds = array<i64: 1>, scalar_prefetch = 0 : i64, scratch_operands = 0 : i64, tpu.core_type = #tpu.core_type<tc>, window_params = [{transform_indices = @transform_0, window_bounds = array<i64: 8, 2>}, {pipeline_mode = #tpu.pipeline_mode<synchronous>, transform_indices = @transform_1, window_bounds = array<i64: 2, 128>}, {pipeline_mode = #tpu.pipeline_mode<synchronous>, transform_indices = @transform_2, window_bounds = array<i64: 1, 128>}, {pipeline_mode = #tpu.pipeline_mode<synchronous>, transform_indices = @transform_3, window_bounds = array<i64: 128, 128>}, {pipeline_mode = #tpu.pipeline_mode<synchronous>, transform_indices = @transform_4, window_bounds = array<i64: 1, 128>}, {transform_indices = @transform_5, window_bounds = array<i64: 8, 128>}]} {
    %c0 = arith.constant 0 : index
    %c0_0 = arith.constant 0 : index
    %0 = vector.load %arg1[%c0, %c0_0] : memref<8x2xf32, #tpu.memory_space<vmem>>, vector<8x2xf32>
    %c0_1 = arith.constant 0 : index
    %c0_2 = arith.constant 0 : index
    %1 = vector.load %arg2[%c0_1, %c0_2] : memref<2x128xf32, #tpu.memory_space<vmem>>, vector<2x128xf32>
    %c0_3 = arith.constant 0 : index
    %c0_4 = arith.constant 0 : index
    %2 = vector.load %arg3[%c0_3, %c0_4] : memref<1x128xf32, #tpu.memory_space<vmem>>, vector<1x128xf32>
    %3 = vector.extract_strided_slice %0 {offsets = [0, 0], sizes = [8, 1], strides = [1, 1]} : vector<8x2xf32> to vector<8x1xf32>
    %4 = vector.extract_strided_slice %1 {offsets = [0, 0], sizes = [1, 128], strides = [1, 1]} : vector<2x128xf32> to vector<1x128xf32>
    %5 = vector.broadcast %3 : vector<8x1xf32> to vector<8x128xf32>
    %6 = vector.broadcast %4 : vector<1x128xf32> to vector<8x128xf32>
    %7 = arith.mulf %5, %6 : vector<8x128xf32>
    %8 = vector.broadcast %2 : vector<1x128xf32> to vector<8x128xf32>
    %9 = arith.addf %8, %7 : vector<8x128xf32>
    %10 = vector.extract_strided_slice %0 {offsets = [0, 1], sizes = [8, 1], strides = [1, 1]} : vector<8x2xf32> to vector<8x1xf32>
    %11 = vector.extract_strided_slice %1 {offsets = [1, 0], sizes = [1, 128], strides = [1, 1]} : vector<2x128xf32> to vector<1x128xf32>
    %12 = vector.broadcast %10 : vector<8x1xf32> to vector<8x128xf32>
    %13 = vector.broadcast %11 : vector<1x128xf32> to vector<8x128xf32>
    %14 = arith.mulf %12, %13 : vector<8x128xf32>
    %15 = arith.addf %9, %14 : vector<8x128xf32>
    %cst = arith.constant 0.000000e+00 : f32
    %16 = vector.broadcast %cst : f32 to vector<8x128xf32>
    %17 = arith.maximumf %15, %16 : vector<8x128xf32>
    %c0_5 = arith.constant 0 : index
    %c0_6 = arith.constant 0 : index
    %18 = vector.load %arg4[%c0_5, %c0_6] : memref<128x128xf32, #tpu.memory_space<vmem>>, vector<128x128xf32>
    %cst_7 = arith.constant dense<0.000000e+00> : vector<8x128xf32>
    %19 = tpu.matmul %17, %18, %cst_7 {dimension_numbers = #tpu.dot_dimension_numbers<[1], [0], [0], [1], [0, 0, 1, 1], [], []>} : vector<8x128xf32>, vector<128x128xf32>, vector<8x128xf32> -> vector<8x128xf32>
    %c0_8 = arith.constant 0 : index
    %c0_9 = arith.constant 0 : index
    %20 = vector.load %arg5[%c0_8, %c0_9] : memref<1x128xf32, #tpu.memory_space<vmem>>, vector<1x128xf32>
    %21 = vector.broadcast %20 : vector<1x128xf32> to vector<8x128xf32>
    %22 = arith.addf %19, %21 : vector<8x128xf32>
    %23 = tpu.iota {dimensions = array<i32: 1>} : vector<8x128xi32>
    %c10_i32 = arith.constant 10 : i32
    %24 = vector.broadcast %c10_i32 : i32 to vector<8x128xi32>
    %25 = arith.cmpi sge, %23, %24 : vector<8x128xi32>
    %c12_i32 = arith.constant 12 : i32
    %26 = vector.broadcast %c12_i32 : i32 to vector<8x128xi32>
    %27 = arith.cmpi slt, %23, %26 : vector<8x128xi32>
    %28 = arith.andi %25, %27 : vector<8x128xi1>
    %cst_10 = arith.constant 0xFF800000 : f32
    %29 = vector.broadcast %cst_10 : f32 to vector<8x128xf32>
    %30 = arith.select %28, %22, %29 : vector<8x128xi1>, vector<8x128xf32>
    %cst_11 = arith.constant dense<0xFF800000> : vector<8xf32>
    %31 = vector.multi_reduction <maximumf>, %30, %cst_11 [1] : vector<8x128xf32> to vector<8xf32>
    %32 = vector.shape_cast %31 : vector<8xf32> to vector<8x1xf32>
    %33 = vector.broadcast %32 : vector<8x1xf32> to vector<8x128xf32>
    %34 = arith.subf %30, %33 : vector<8x128xf32>
    %35 = math.exp %34 : vector<8x128xf32>
    %cst_12 = arith.constant dense<0.000000e+00> : vector<8xf32>
    %36 = vector.multi_reduction <add>, %35, %cst_12 [1] : vector<8x128xf32> to vector<8xf32>
    %37 = vector.shape_cast %36 : vector<8xf32> to vector<8x1xf32>
    %38 = math.log %37 : vector<8x1xf32>
    %39 = arith.addf %38, %32 : vector<8x1xf32>
    %40 = vector.broadcast %39 : vector<8x1xf32> to vector<8x128xf32>
    %41 = arith.subf %22, %40 : vector<8x128xf32>
    %42 = arith.select %28, %41, %17 : vector<8x128xi1>, vector<8x128xf32>
    %c0_13 = arith.constant 0 : index
    %c0_14 = arith.constant 0 : index
    %43 = vector.load %arg6[%c0_13, %c0_14] : memref<8x128xf32, #tpu.memory_space<vmem>>, vector<8x128xf32>
    tpu.vector_store %arg6[%c0_13, %c0_14], %42 {strides = array<i32>} : memref<8x128xf32, #tpu.memory_space<vmem>>, vector<8x128xf32>,
    return
  }
  func.func @transform_0(%arg0: i32) -> (i32, i32) {
    %c0_i32 = arith.constant 0 : i32
    %c0_i32_0 = arith.constant 0 : i32
    return %arg0, %c0_i32 : i32, i32
  }
  func.func @transform_1(%arg0: i32) -> (i32, i32) {
    %c0_i32 = arith.constant 0 : i32
    %c0_i32_0 = arith.constant 0 : i32
    %c0_i32_1 = arith.constant 0 : i32
    return %c0_i32, %c0_i32_0 : i32, i32
  }
  func.func @transform_2(%arg0: i32) -> (i32, i32) {
    %c0_i32 = arith.constant 0 : i32
    %c0_i32_0 = arith.constant 0 : i32
    %c0_i32_1 = arith.constant 0 : i32
    return %c0_i32, %c0_i32_0 : i32, i32
  }
  func.func @transform_3(%arg0: i32) -> (i32, i32) {
    %c0_i32 = arith.constant 0 : i32
    %c0_i32_0 = arith.constant 0 : i32
    %c0_i32_1 = arith.constant 0 : i32
    return %c0_i32, %c0_i32_0 : i32, i32
  }
  func.func @transform_4(%arg0: i32) -> (i32, i32) {
    %c0_i32 = arith.constant 0 : i32
    %c0_i32_0 = arith.constant 0 : i32
    %c0_i32_1 = arith.constant 0 : i32
    return %c0_i32, %c0_i32_0 : i32, i32
  }
  func.func @transform_5(%arg0: i32) -> (i32, i32) {
    %c0_i32 = arith.constant 0 : i32
    %c0_i32_0 = arith.constant 0 : i32
    return %arg0, %c0_i32 : i32, i32
  }
}

</mosaic_0001>

<llo_original>
// kernel: my_model_forward.1
$region0: #{my_model_forward.1}
  #allocation0 [shape = 'u32[]', space=smem, size = 0x4, offset = 0x4, fixed_abs, tag = 'smem constant byte address 0x4 - core index']
  #allocation1 [shape = 'u32[144,128]{1,0:T(1,128)}', space=vmem, size = 0x12000, scoped, tag = 'internal scratch']
  %s0 = inlined_call_operand.vmem [shape: f32[8,2], index: 0, kind: input, shape index: {}]
  %s1 = inlined_call_operand.vmem [shape: f32[2,128], index: 1, kind: input, shape index: {}]
  %s2 = inlined_call_operand.vmem [shape: f32[1,128], index: 2, kind: input, shape index: {}]
  %s3 = inlined_call_operand.vmem [shape: f32[128,128], index: 3, kind: input, shape index: {}]
  %s4 = inlined_call_operand.vmem [shape: f32[1,128], index: 4, kind: input, shape index: {}]
  %s5 = inlined_call_operand.vmem [shape: f32[8,128], index: 5, kind: output, shape index: {}]
  %s6 = sld [smem:[#allocation0]]
  $region30: #{my_model_forward.1} parent=0
    _
  %s8 = ssub.s32 1, %s6
  %s9 = scalar_select 0, %s8, %s6
  // Predicated region
  $region2: #{my_model_forward.1} parent=0 // pred_check
    _
  $region3: #{my_model_forward.1} parent=0 // pred_check_branch
    %11 = sbr.rel (0) target = $region5
  $region4: #{my_model_forward.1} parent=0 // pred_region
    _
  $region5: #{my_model_forward.1} parent=0 // pred_fallthru
    _
  // Predicated region
  $region6: #{my_model_forward.1} parent=0 // pred_check
    _
  $region7: #{my_model_forward.1} parent=0 // pred_check_branch
    %13 = sbr.rel (0) target = $region9
  $region8: #{my_model_forward.1} parent=0 // pred_region
    _
  $region9: #{my_model_forward.1} parent=0 // pred_fallthru
    _
  // Predicated region
  $region10: #{my_model_forward.1} parent=0 // pred_check
    _
  $region11: #{my_model_forward.1} parent=0 // pred_check_branch
    %15 = sbr.rel (0) target = $region13
  $region12: #{my_model_forward.1} parent=0 // pred_region
    _
  $region13: #{my_model_forward.1} parent=0 // pred_fallthru
    _
  // Predicated region
  $region14: #{my_model_forward.1} parent=0 // pred_check
    _
  $region15: #{my_model_forward.1} parent=0 // pred_check_branch
    %17 = sbr.rel (0) target = $region17
  $region16: #{my_model_forward.1} parent=0 // pred_region
    _
  $region17: #{my_model_forward.1} parent=0 // pred_fallthru
    _
  // Predicated region
  $region18: #{my_model_forward.1} parent=0 // pred_check
    _
  $region19: #{my_model_forward.1} parent=0 // pred_check_branch
    %19 = sbr.rel (0) target = $region21
  $region20: #{my_model_forward.1} parent=0 // pred_region
    _
  $region21: #{my_model_forward.1} parent=0 // pred_fallthru
    _
  %v20 = vld [vmem:[%s0] sm:$0xff]
  %v21 = vld [vmem:[%s1] sm:$0x3]
  %v22 = vld [vmem:[%s2] sm:$0x1]
  %24 = vset.pattern.permute.xlu0 0
  %25 = vperm.xlu0 %24, %v20
  %v26 = vpop.permute.xlu0 %25
  %v28 = vlaneseq
  %v29 = vshrl.u32 %v28, 7
  %v30 = vsub.s32 0, %v29
  %v31 = vrot.slane %v21, %v30
  %v32 = vmul.f32 %v26, %v31
  %v34 = vlaneseq
  %v35 = vshrl.u32 %v34, 7
  %v36 = vsub.s32 0, %v35
  %v37 = vrot.slane %v22, %v36
  %v39 = vadd.f32 %v37, %v32
  %40 = vset.pattern.permute.xlu0 1
  %41 = vperm.xlu0 %40, %v20
  %v42 = vpop.permute.xlu0 %41
  %v44 = vlaneseq
  %v45 = vshrl.u32 %v44, 7
  %v46 = vsub.s32 1, %v45
  %v47 = vrot.slane %v21, %v46
  %v48 = vmul.f32 %v42, %v47
  %v49 = vadd.f32 %v39, %v48
  %v50 = vmax.f32 %v49, 0.0
  %v51 = vld [vmem:[%s3] sm:$0xff]
  %v52 = vld [vmem:[%s3 + $0x8] sm:$0xff]
  %v53 = vld [vmem:[%s3 + $0x10] sm:$0xff]
  %v54 = vld [vmem:[%s3 + $0x18] sm:$0xff]
  %v55 = vld [vmem:[%s3 + $0x20] sm:$0xff]
  %v56 = vld [vmem:[%s3 + $0x28] sm:$0xff]
  %v57 = vld [vmem:[%s3 + $0x30] sm:$0xff]
  %v58 = vld [vmem:[%s3 + $0x38] sm:$0xff]
  %v59 = vld [vmem:[%s3 + $0x40] sm:$0xff]
  %v60 = vld [vmem:[%s3 + $0x48] sm:$0xff]
  %v61 = vld [vmem:[%s3 + $0x50] sm:$0xff]
  %v62 = vld [vmem:[%s3 + $0x58] sm:$0xff]
  %v63 = vld [vmem:[%s3 + $0x60] sm:$0xff]
  %v64 = vld [vmem:[%s3 + $0x68] sm:$0xff]
  %v65 = vld [vmem:[%s3 + $0x70] sm:$0xff]
  %v66 = vld [vmem:[%s3 + $0x78] sm:$0xff]
  %v67 = vld [vmem:[%s4] sm:$0x1]
  %v69 = vlaneseq
  %v70 = vshrl.u32 %v69, 7
  %v71 = vsub.s32 0, %v70
  %v72 = vrot.slane %v67, %v71
  %74 = vmatprep.subr.mxu0 0.0
  %75 = vmatpush1.msra.mxu0 %v51
  %76 = vmatprep.subr.mxu0 0.0
  %77 = vmatpush1.msra.mxu0 %v52
  %78 = vmatprep.subr.mxu0 0.0
  %79 = vmatpush1.msra.mxu0 %v53
  %80 = vmatprep.subr.mxu0 0.0
  %81 = vmatpush1.msra.mxu0 %v54
  %82 = vmatprep.subr.mxu0 0.0
  %83 = vmatpush1.msra.mxu0 %v55
  %84 = vmatprep.subr.mxu0 0.0
  %85 = vmatpush1.msra.mxu0 %v56
  %86 = vmatprep.subr.mxu0 0.0
  %87 = vmatpush1.msra.mxu0 %v57
  %88 = vmatprep.subr.mxu0 0.0
  %89 = vmatpush1.msra.mxu0 %v58
  %90 = vmatprep.subr.mxu0 0.0
  %91 = vmatpush1.msra.mxu0 %v59
  %92 = vmatprep.subr.mxu0 0.0
  %93 = vmatpush1.msra.mxu0 %v60
  %94 = vmatprep.subr.mxu0 0.0
  %95 = vmatpush1.msra.mxu0 %v61
  %96 = vmatprep.subr.mxu0 0.0
  %97 = vmatpush1.msra.mxu0 %v62
  %98 = vmatprep.subr.mxu0 0.0
  %99 = vmatpush1.msra.mxu0 %v63
  %100 = vmatprep.subr.mxu0 0.0
  %101 = vmatpush1.msra.mxu0 %v64
  %102 = vmatprep.subr.mxu0 0.0
  %103 = vmatpush1.msra.mxu0 %v65
  %104 = vmatprep.subr.mxu0 0.0
  %105 = vmatpush1.msra.mxu0 %v66
  %106 = vmatprep.subr.mxu0 0.0
  %107 = vmatpush1.msra.mxu0 0.0
  %108 = vmatprep.subr.mxu0 0.0
  %109 = vmatpush1.msra.mxu0 0.0
  %110 = vmatprep.subr.mxu0 0.0
  %111 = vmatpush1.msra.mxu0 0.0
  %112 = vmatprep.subr.mxu0 0.0
  %113 = vmatpush1.msra.mxu0 0.0
  %114 = vmatprep.subr.mxu0 0.0
  %115 = vmatpush1.msra.mxu0 0.0
  %116 = vmatprep.subr.mxu0 0.0
  %117 = vmatpush1.msra.mxu0 0.0
  %118 = vmatprep.subr.mxu0 0.0
  %119 = vmatpush1.msra.mxu0 0.0
  %120 = vmatprep.subr.mxu0 0.0
  %121 = vmatpush1.msra.mxu0 0.0
  %122 = vmatprep.subr.mxu0 0.0
  %123 = vmatpush1.msra.mxu0 0.0
  %124 = vmatprep.subr.mxu0 0.0
  %125 = vmatpush1.msra.mxu0 0.0
  %126 = vmatprep.subr.mxu0 0.0
  %127 = vmatpush1.msra.mxu0 0.0
  %128 = vmatprep.subr.mxu0 0.0
  %129 = vmatpush1.msra.mxu0 0.0
  %130 = vmatprep.subr.mxu0 0.0
  %131 = vmatpush1.msra.mxu0 0.0
  %132 = vmatprep.subr.mxu0 0.0
  %133 = vmatpush1.msra.mxu0 0.0
  %134 = vmatprep.subr.mxu0 0.0
  %135 = vmatpush1.msra.mxu0 0.0
  %136 = vmatprep.subr.mxu0 0.0
  %137 = vmatpush1.msra.mxu0 0.0
  %138 = vmatprep.mubr.f32.mxu0 0.0
  %139 = vmatmul.mubr.f32.gmra.mrb[0].mxu0 %v50
  %v140 = vpop.f32.mrb[0].mxu0
  %v141 = vadd.f32 %v72, %v140
  %v142 = vpop.f32.mrb[0].mxu0
  %143 = vdwg.mxu0
  %v144 = vlaneseq
  %v145 = vand.u32 %v144, 127
  %vm146 = vcmp.ge.s32.totalorder %v145, 10
  %vm147 = vcmp.lt.s32.totalorder %v145, 12
  %vm148 = vmand %vm146, %vm147
  %v149 = vsel %vm148, %v141, -inf
  %150 = vmax.xlane.f32.xlu0 %v149
  %v151 = vpop.xlane.xlu0 %150
  %v152 = vsub.f32 %v149, %v151
  %v153 = vmul.f32 %v152, 1.442695
  %v154 = vpow.pop %v153
  %155 = vadd.xlane.f32.xlu0 %v154
  %v156 = vpop.xlane.xlu0 %155
  %v157 = vlog2.pop %v156
  %v158 = vmul.f32 %v157, 0.6931472
  %v159 = vadd.f32 %v158, %v151
  %v160 = vsub.f32 %v141, %v159
  %v161 = vsel %vm148, %v160, %v50
  %162 = vst [vmem:[%s5] sm:$0xff] %v161
  // Predicated region
  $region22: #{my_model_forward.1} parent=0 // pred_check
    _
  $region23: #{my_model_forward.1} parent=0 // pred_check_branch
    %164 = sbr.rel (0) target = $region25
  $region24: #{my_model_forward.1} parent=0 // pred_region
    _
  $region25: #{my_model_forward.1} parent=0 // pred_fallthru
    _
  // Predicated region
  $region26: #{my_model_forward.1} parent=0 // pred_check
    _
  $region27: #{my_model_forward.1} parent=0 // pred_check_branch
    %166 = sbr.rel (0) target = $region29
  $region28: #{my_model_forward.1} parent=0 // pred_region
    _
  $region29: #{my_model_forward.1} parent=0 // pred_fallthru
    _

</llo_original>
